<compile_context>
chip_gen: v7x
topology: tpu7x:2x2x1
jax: 0.10.0
libtpu: 0.0.40
codegen_flags: <defaults>
</compile_context>

<pallas_src>
import jax
import jax.numpy as jnp
from jax.experimental import pallas as pl
from jax.experimental.pallas import tpu as pltpu

HIDDEN = 10   # hidden width of layer1
LANE = 128    # TPU lane width; batch is laid out lane-dense


def mlp_kernel(params_ref, x_ref, o_ref):
    # params_ref: SMEM f32[31] = [w1(10) | b1(10) | w2(10) | b2(1)]
    # x_ref, o_ref: VMEM (tile_r, 128) f32 tiles of the lane-dense batch.
    x = x_ref[...]
    acc = jnp.zeros_like(x)
    # Unrolled hidden loop: scalar weights broadcast from SMEM, pure
    # VALU (mul/add) + EUP (sigmoid) work, one running accumulator.
    for j in range(HIDDEN):
        w1j = params_ref[j]
        b1j = params_ref[HIDDEN + j]
        w2j = params_ref[2 * HIDDEN + j]
        acc = acc + w2j * jax.nn.sigmoid(x * w1j + b1j)
    o_ref[...] = acc + params_ref[3 * HIDDEN]


def mlp_forward(x, w1, b1, w2, b2, *, max_tile_r=1024):
    """x: (B, 1) float32. w1:(1,10) b1:(1,10) w2:(10,1) b2:(1,1) (in,out) layout."""
    B = x.shape[0]

    # Flatten all parameters into one small f32 vector -> SMEM via scalar prefetch.
    params = jnp.concatenate([
        w1.reshape(-1), b1.reshape(-1), w2.reshape(-1), b2.reshape(-1)
    ]).astype(jnp.float32)  # f32[31]

    # Lane-dense batch layout: (B,) -> (rows_padded, 128), rows tiled by tile_r.
    rows = -(-B // LANE)                       # ceil(B / 128)
    rows_aligned = ((rows + 7) // 8) * 8       # sublane-align
    tile_r = min(max_tile_r, rows_aligned)     # both multiples of 8
    rows_padded = ((rows_aligned + tile_r - 1) // tile_r) * tile_r
    total = rows_padded * LANE

    x_flat = jnp.pad(x.reshape(-1).astype(jnp.float32), (0, total - B))
    x2d = x_flat.reshape(rows_padded, LANE)

    out2d = pl.pallas_call(
        mlp_kernel,
        out_shape=jax.ShapeDtypeStruct((rows_padded, LANE), jnp.float32),
        grid_spec=pltpu.PrefetchScalarGridSpec(
            num_scalar_prefetch=1,                     # params -> SMEM
            grid=(rows_padded // tile_r,),
            in_specs=[pl.BlockSpec((tile_r, LANE), lambda i, p: (i, 0))],
            out_specs=pl.BlockSpec((tile_r, LANE), lambda i, p: (i, 0)),
        ),
        compiler_params=pltpu.CompilerParams(
            dimension_semantics=("parallel",)),        # shard batch over TCs (v7x)
    )(params, x2d)

    return out2d.reshape(-1)[:B].reshape(B, 1).astype(x.dtype)


def init_params(key):
    """Deterministic synthetic init mirroring nn.Linear shapes.

    layer1: weight (10, 1), bias (10,)  -> stored transposed as (1, 10)
    layer2: weight (1, 10), bias (1,)   -> stored transposed as (10, 1)
    PyTorch-style uniform(-1/sqrt(fan_in), 1/sqrt(fan_in)) bounds.
    """
    k1, k2, k3, k4 = jax.random.split(key, 4)
    bound1 = 1.0  # fan_in = 1
    w1 = jax.random.uniform(k1, (1, HIDDEN), jnp.float32, -bound1, bound1)
    b1 = jax.random.uniform(k2, (1, HIDDEN), jnp.float32, -bound1, bound1)
    bound2 = 1.0 / jnp.sqrt(10.0)  # fan_in = 10
    w2 = jax.random.uniform(k3, (HIDDEN, 1), jnp.float32, -bound2, bound2)
    b2 = jax.random.uniform(k4, (1, 1), jnp.float32, -bound2, bound2)
    return w1, b1, w2, b2


if __name__ == "__main__":
    key = jax.random.PRNGKey(0)
    kx, kp = jax.random.split(key)

    batch = 8
    x = jax.random.normal(kx, (batch, 1), jnp.float32)
    w1, b1, w2, b2 = init_params(kp)

    out = mlp_forward(x, w1, b1, w2, b2)
    out = jax.block_until_ready(out)

    # Pure-JAX reference check of the same forward pass.
    ref = jax.nn.sigmoid(x @ w1 + b1) @ w2 + b2
    assert out.shape == (batch, 1)
    assert jnp.allclose(out, ref, atol=1e-5, rtol=1e-5)

    print("KERNEL_OK")
</pallas_src>

<mosaic_0001>
module attributes {stable_mosaic.version = 11 : i64} {
  func.func @mlp_kernel(%arg0: i32, %arg1: memref<31xf32, #tpu.memory_space<smem>>, %arg2: memref<8x128xf32, #tpu.memory_space<vmem>>, %arg3: memref<8x128xf32, #tpu.memory_space<vmem>>) attributes {dimension_semantics = [#tpu.dimension_semantics<parallel>], iteration_bounds = array<i64: 1>, scalar_prefetch = 1 : i64, scratch_operands = 0 : i64, tpu.core_type = #tpu.core_type<tc>, window_params = [{transform_indices = @transform_0, window_bounds = array<i64: 8, 128>}, {transform_indices = @transform_1, window_bounds = array<i64: 8, 128>}]} {
    %c0 = arith.constant 0 : index
    %c0_0 = arith.constant 0 : index
    %0 = vector.load %arg2[%c0, %c0_0] : memref<8x128xf32, #tpu.memory_space<vmem>>, vector<8x128xf32>
    %cst = arith.constant 0.000000e+00 : f32
    %1 = vector.broadcast %cst : f32 to vector<8x128xf32>
    %c0_1 = arith.constant 0 : index
    %2 = memref.load %arg1[%c0_1] : memref<31xf32, #tpu.memory_space<smem>>
    %c10 = arith.constant 10 : index
    %3 = memref.load %arg1[%c10] : memref<31xf32, #tpu.memory_space<smem>>
    %c20 = arith.constant 20 : index
    %4 = memref.load %arg1[%c20] : memref<31xf32, #tpu.memory_space<smem>>
    %5 = vector.broadcast %2 : f32 to vector<8x128xf32>
    %6 = arith.mulf %0, %5 : vector<8x128xf32>
    %7 = vector.broadcast %3 : f32 to vector<8x128xf32>
    %8 = arith.addf %6, %7 : vector<8x128xf32>
    %9 = arith.negf %8 : vector<8x128xf32>
    %10 = math.exp %9 : vector<8x128xf32>
    %cst_2 = arith.constant 1.000000e+00 : f32
    %11 = vector.broadcast %cst_2 : f32 to vector<8x128xf32>
    %12 = arith.addf %11, %10 : vector<8x128xf32>
    %13 = arith.divf %11, %12 : vector<8x128xf32>
    %14 = vector.broadcast %4 : f32 to vector<8x128xf32>
    %15 = arith.mulf %14, %13 : vector<8x128xf32>
    %16 = arith.addf %1, %15 : vector<8x128xf32>
    %c1 = arith.constant 1 : index
    %17 = memref.load %arg1[%c1] : memref<31xf32, #tpu.memory_space<smem>>
    %c11 = arith.constant 11 : index
    %18 = memref.load %arg1[%c11] : memref<31xf32, #tpu.memory_space<smem>>
    %c21 = arith.constant 21 : index
    %19 = memref.load %arg1[%c21] : memref<31xf32, #tpu.memory_space<smem>>
    %20 = vector.broadcast %17 : f32 to vector<8x128xf32>
    %21 = arith.mulf %0, %20 : vector<8x128xf32>
    %22 = vector.broadcast %18 : f32 to vector<8x128xf32>
    %23 = arith.addf %21, %22 : vector<8x128xf32>
    %24 = arith.negf %23 : vector<8x128xf32>
    %25 = math.exp %24 : vector<8x128xf32>
    %cst_3 = arith.constant 1.000000e+00 : f32
    %26 = vector.broadcast %cst_3 : f32 to vector<8x128xf32>
    %27 = arith.addf %26, %25 : vector<8x128xf32>
    %28 = arith.divf %26, %27 : vector<8x128xf32>
    %29 = vector.broadcast %19 : f32 to vector<8x128xf32>
    %30 = arith.mulf %29, %28 : vector<8x128xf32>
    %31 = arith.addf %16, %30 : vector<8x128xf32>
    %c2 = arith.constant 2 : index
    %32 = memref.load %arg1[%c2] : memref<31xf32, #tpu.memory_space<smem>>
    %c12 = arith.constant 12 : index
    %33 = memref.load %arg1[%c12] : memref<31xf32, #tpu.memory_space<smem>>
    %c22 = arith.constant 22 : index
    %34 = memref.load %arg1[%c22] : memref<31xf32, #tpu.memory_space<smem>>
    %35 = vector.broadcast %32 : f32 to vector<8x128xf32>
    %36 = arith.mulf %0, %35 : vector<8x128xf32>
    %37 = vector.broadcast %33 : f32 to vector<8x128xf32>
    %38 = arith.addf %36, %37 : vector<8x128xf32>
    %39 = arith.negf %38 : vector<8x128xf32>
    %40 = math.exp %39 : vector<8x128xf32>
    %cst_4 = arith.constant 1.000000e+00 : f32
    %41 = vector.broadcast %cst_4 : f32 to vector<8x128xf32>
    %42 = arith.addf %41, %40 : vector<8x128xf32>
    %43 = arith.divf %41, %42 : vector<8x128xf32>
    %44 = vector.broadcast %34 : f32 to vector<8x128xf32>
    %45 = arith.mulf %44, %43 : vector<8x128xf32>
    %46 = arith.addf %31, %45 : vector<8x128xf32>
    %c3 = arith.constant 3 : index
    %47 = memref.load %arg1[%c3] : memref<31xf32, #tpu.memory_space<smem>>
    %c13 = arith.constant 13 : index
    %48 = memref.load %arg1[%c13] : memref<31xf32, #tpu.memory_space<smem>>
    %c23 = arith.constant 23 : index
    %49 = memref.load %arg1[%c23] : memref<31xf32, #tpu.memory_space<smem>>
    %50 = vector.broadcast %47 : f32 to vector<8x128xf32>
    %51 = arith.mulf %0, %50 : vector<8x128xf32>
    %52 = vector.broadcast %48 : f32 to vector<8x128xf32>
    %53 = arith.addf %51, %52 : vector<8x128xf32>
    %54 = arith.negf %53 : vector<8x128xf32>
    %55 = math.exp %54 : vector<8x128xf32>
    %cst_5 = arith.constant 1.000000e+00 : f32
    %56 = vector.broadcast %cst_5 : f32 to vector<8x128xf32>
    %57 = arith.addf %56, %55 : vector<8x128xf32>
    %58 = arith.divf %56, %57 : vector<8x128xf32>
    %59 = vector.broadcast %49 : f32 to vector<8x128xf32>
    %60 = arith.mulf %59, %58 : vector<8x128xf32>
    %61 = arith.addf %46, %60 : vector<8x128xf32>
    %c4 = arith.constant 4 : index
    %62 = memref.load %arg1[%c4] : memref<31xf32, #tpu.memory_space<smem>>
    %c14 = arith.constant 14 : index
    %63 = memref.load %arg1[%c14] : memref<31xf32, #tpu.memory_space<smem>>
    %c24 = arith.constant 24 : index
    %64 = memref.load %arg1[%c24] : memref<31xf32, #tpu.memory_space<smem>>
    %65 = vector.broadcast %62 : f32 to vector<8x128xf32>
    %66 = arith.mulf %0, %65 : vector<8x128xf32>
    %67 = vector.broadcast %63 : f32 to vector<8x128xf32>
    %68 = arith.addf %66, %67 : vector<8x128xf32>
    %69 = arith.negf %68 : vector<8x128xf32>
    %70 = math.exp %69 : vector<8x128xf32>
    %cst_6 = arith.constant 1.000000e+00 : f32
    %71 = vector.broadcast %cst_6 : f32 to vector<8x128xf32>
    %72 = arith.addf %71, %70 : vector<8x128xf32>
    %73 = arith.divf %71, %72 : vector<8x128xf32>
    %74 = vector.broadcast %64 : f32 to vector<8x128xf32>
    %75 = arith.mulf %74, %73 : vector<8x128xf32>
    %76 = arith.addf %61, %75 : vector<8x128xf32>
    %c5 = arith.constant 5 : index
    %77 = memref.load %arg1[%c5] : memref<31xf32, #tpu.memory_space<smem>>
    %c15 = arith.constant 15 : index
    %78 = memref.load %arg1[%c15] : memref<31xf32, #tpu.memory_space<smem>>
    %c25 = arith.constant 25 : index
    %79 = memref.load %arg1[%c25] : memref<31xf32, #tpu.memory_space<smem>>
    %80 = vector.broadcast %77 : f32 to vector<8x128xf32>
    %81 = arith.mulf %0, %80 : vector<8x128xf32>
    %82 = vector.broadcast %78 : f32 to vector<8x128xf32>
    %83 = arith.addf %81, %82 : vector<8x128xf32>
    %84 = arith.negf %83 : vector<8x128xf32>
    %85 = math.exp %84 : vector<8x128xf32>
    %cst_7 = arith.constant 1.000000e+00 : f32
    %86 = vector.broadcast %cst_7 : f32 to vector<8x128xf32>
    %87 = arith.addf %86, %85 : vector<8x128xf32>
    %88 = arith.divf %86, %87 : vector<8x128xf32>
    %89 = vector.broadcast %79 : f32 to vector<8x128xf32>
    %90 = arith.mulf %89, %88 : vector<8x128xf32>
    %91 = arith.addf %76, %90 : vector<8x128xf32>
    %c6 = arith.constant 6 : index
    %92 = memref.load %arg1[%c6] : memref<31xf32, #tpu.memory_space<smem>>
    %c16 = arith.constant 16 : index
    %93 = memref.load %arg1[%c16] : memref<31xf32, #tpu.memory_space<smem>>
    %c26 = arith.constant 26 : index
    %94 = memref.load %arg1[%c26] : memref<31xf32, #tpu.memory_space<smem>>
    %95 = vector.broadcast %92 : f32 to vector<8x128xf32>
    %96 = arith.mulf %0, %95 : vector<8x128xf32>
    %97 = vector.broadcast %93 : f32 to vector<8x128xf32>
    %98 = arith.addf %96, %97 : vector<8x128xf32>
    %99 = arith.negf %98 : vector<8x128xf32>
    %100 = math.exp %99 : vector<8x128xf32>
    %cst_8 = arith.constant 1.000000e+00 : f32
    %101 = vector.broadcast %cst_8 : f32 to vector<8x128xf32>
    %102 = arith.addf %101, %100 : vector<8x128xf32>
    %103 = arith.divf %101, %102 : vector<8x128xf32>
    %104 = vector.broadcast %94 : f32 to vector<8x128xf32>
    %105 = arith.mulf %104, %103 : vector<8x128xf32>
    %106 = arith.addf %91, %105 : vector<8x128xf32>
    %c7 = arith.constant 7 : index
    %107 = memref.load %arg1[%c7] : memref<31xf32, #tpu.memory_space<smem>>
    %c17 = arith.constant 17 : index
    %108 = memref.load %arg1[%c17] : memref<31xf32, #tpu.memory_space<smem>>
    %c27 = arith.constant 27 : index
    %109 = memref.load %arg1[%c27] : memref<31xf32, #tpu.memory_space<smem>>
    %110 = vector.broadcast %107 : f32 to vector<8x128xf32>
    %111 = arith.mulf %0, %110 : vector<8x128xf32>
    %112 = vector.broadcast %108 : f32 to vector<8x128xf32>
    %113 = arith.addf %111, %112 : vector<8x128xf32>
    %114 = arith.negf %113 : vector<8x128xf32>
    %115 = math.exp %114 : vector<8x128xf32>
    %cst_9 = arith.constant 1.000000e+00 : f32
    %116 = vector.broadcast %cst_9 : f32 to vector<8x128xf32>
    %117 = arith.addf %116, %115 : vector<8x128xf32>
    %118 = arith.divf %116, %117 : vector<8x128xf32>
    %119 = vector.broadcast %109 : f32 to vector<8x128xf32>
    %120 = arith.mulf %119, %118 : vector<8x128xf32>
    %121 = arith.addf %106, %120 : vector<8x128xf32>
    %c8 = arith.constant 8 : index
    %122 = memref.load %arg1[%c8] : memref<31xf32, #tpu.memory_space<smem>>
    %c18 = arith.constant 18 : index
    %123 = memref.load %arg1[%c18] : memref<31xf32, #tpu.memory_space<smem>>
    %c28 = arith.constant 28 : index
    %124 = memref.load %arg1[%c28] : memref<31xf32, #tpu.memory_space<smem>>
    %125 = vector.broadcast %122 : f32 to vector<8x128xf32>
    %126 = arith.mulf %0, %125 : vector<8x128xf32>
    %127 = vector.broadcast %123 : f32 to vector<8x128xf32>
    %128 = arith.addf %126, %127 : vector<8x128xf32>
    %129 = arith.negf %128 : vector<8x128xf32>
    %130 = math.exp %129 : vector<8x128xf32>
    %cst_10 = arith.constant 1.000000e+00 : f32
    %131 = vector.broadcast %cst_10 : f32 to vector<8x128xf32>
    %132 = arith.addf %131, %130 : vector<8x128xf32>
    %133 = arith.divf %131, %132 : vector<8x128xf32>
    %134 = vector.broadcast %124 : f32 to vector<8x128xf32>
    %135 = arith.mulf %134, %133 : vector<8x128xf32>
    %136 = arith.addf %121, %135 : vector<8x128xf32>
    %c9 = arith.constant 9 : index
    %137 = memref.load %arg1[%c9] : memref<31xf32, #tpu.memory_space<smem>>
    %c19 = arith.constant 19 : index
    %138 = memref.load %arg1[%c19] : memref<31xf32, #tpu.memory_space<smem>>
    %c29 = arith.constant 29 : index
    %139 = memref.load %arg1[%c29] : memref<31xf32, #tpu.memory_space<smem>>
    %140 = vector.broadcast %137 : f32 to vector<8x128xf32>
    %141 = arith.mulf %0, %140 : vector<8x128xf32>
    %142 = vector.broadcast %138 : f32 to vector<8x128xf32>
    %143 = arith.addf %141, %142 : vector<8x128xf32>
    %144 = arith.negf %143 : vector<8x128xf32>
    %145 = math.exp %144 : vector<8x128xf32>
    %cst_11 = arith.constant 1.000000e+00 : f32
    %146 = vector.broadcast %cst_11 : f32 to vector<8x128xf32>
    %147 = arith.addf %146, %145 : vector<8x128xf32>
    %148 = arith.divf %146, %147 : vector<8x128xf32>
    %149 = vector.broadcast %139 : f32 to vector<8x128xf32>
    %150 = arith.mulf %149, %148 : vector<8x128xf32>
    %151 = arith.addf %136, %150 : vector<8x128xf32>
    %c30 = arith.constant 30 : index
    %152 = memref.load %arg1[%c30] : memref<31xf32, #tpu.memory_space<smem>>
    %153 = vector.broadcast %152 : f32 to vector<8x128xf32>
    %154 = arith.addf %151, %153 : vector<8x128xf32>
    %c0_12 = arith.constant 0 : index
    %c0_13 = arith.constant 0 : index
    %155 = vector.load %arg3[%c0_12, %c0_13] : memref<8x128xf32, #tpu.memory_space<vmem>>, vector<8x128xf32>
    tpu.vector_store %arg3[%c0_12, %c0_13], %154 {strides = array<i32>} : memref<8x128xf32, #tpu.memory_space<vmem>>, vector<8x128xf32>,
    return
  }
  func.func @transform_0(%arg0: i32, %arg1: memref<31xf32, #tpu.memory_space<smem>>) -> (i32, i32) {
    %c0_i32 = arith.constant 0 : i32
    %c0_i32_0 = arith.constant 0 : i32
    return %arg0, %c0_i32 : i32, i32
  }
  func.func @transform_1(%arg0: i32, %arg1: memref<31xf32, #tpu.memory_space<smem>>) -> (i32, i32) {
    %c0_i32 = arith.constant 0 : i32
    %c0_i32_0 = arith.constant 0 : i32
    return %arg0, %c0_i32 : i32, i32
  }
}

</mosaic_0001>

<llo_original>
// kernel: tpu_custom_call.1
$region0: #{tpu_custom_call.1}
  #allocation0 [shape = 'u32[]', space=smem, size = 0x4, offset = 0x4, fixed_abs, tag = 'smem constant byte address 0x4 - core index']
  #allocation1 [shape = 'u32[144,128]{1,0:T(1,128)}', space=vmem, size = 0x12000, scoped, tag = 'internal scratch']
  #allocation2 [shape = 's32[1]{0}', space=sflag, size = 0x4, scoped, tag = 'scoped memory for tpu_custom_call.1']
  #allocation3 [shape = 'u8[512]{0}', space=smem, size = 0x200, scoped, tag = 'prefetched SMEM operand 0']
  %s0 = inlined_call_operand.hbm [shape: f32[31], index: 0, kind: input, shape index: {}]
  %s1 = inlined_call_operand.hbm [shape: f32[8,128], index: 1, kind: input, shape index: {}]
  %s2 = inlined_call_operand.hbm [shape: f32[8,128], index: 2, kind: output, shape index: {}]
  %s3 = sld [smem:[#allocation0]]
  $region18: #{tpu_custom_call.1} parent=0
    _
  %s5 = ssub.s32 1, %s3
  %s6 = scalar_select 0, %s5, %s3
  %8 = dma.hbm_to_smem %s0, 16, [#allocation3], [#allocation2]
  %9 = dma.done [#allocation2], 16
  %10 = sfence
  $region1: #{tpu_custom_call.1} parent=0
    #allocation4 [shape = 'u8[4096]{0}', space=vmem, size = 0x1000, scoped, tag = 'input window, operand 1, single buffered']
    #allocation5 [shape = 's32[1]{0}', space=sflag, size = 0x4, scoped, tag = 'scoped memory for tpu_custom_call.1']
    #allocation6 [shape = 's32[1]{0}', space=sflag, size = 0x4, scoped, tag = 'scoped memory for tpu_custom_call.1']
    #allocation7 [shape = 'u8[4096]{0}', space=vmem, size = 0x1000, scoped, tag = 'output window, operand 0, single buffered']
    %11 = vsyncpa [#allocation5], 0
    %12 = vsyncpa [#allocation6], 0
    // Predicated region
    $region2: #{tpu_custom_call.1} parent=1 // pred_check
      _
    $region3: #{tpu_custom_call.1} parent=1 // pred_check_branch
      %14 = sbr.rel (0) target = $region5
    $region4: #{tpu_custom_call.1} parent=1 // pred_region
      %s16 = ssub.s32 128, 128
      %17 = vsyncadd [#allocation5], %s16
      %s19 = sshll.u32 [#allocation4], 4
      %s20 = int_to_ptr.vmem [resolvable:$true] %s19
      %22 = dma.hbm_to_vmem [thread:$0]  %s1, 128, %s20, [#allocation5]
    $region5: #{tpu_custom_call.1} parent=1 // pred_fallthru
      _
    // Predicated region
    $region6: #{tpu_custom_call.1} parent=1 // pred_check
      _
    $region7: #{tpu_custom_call.1} parent=1 // pred_check_branch
      %24 = sbr.rel (0) target = $region9
    $region8: #{tpu_custom_call.1} parent=1 // pred_region
      %25 = dma.done [#allocation5], 128
    $region9: #{tpu_custom_call.1} parent=1 // pred_fallthru
      _
    %v26 = vld [vmem:[#allocation4] sm:$0xff]
    %s27 = sld [smem:[#allocation3]]
    %s28 = sld [smem:[#allocation3 + $0xa]]
    %s29 = sld [smem:[#allocation3 + $0x14]]
    %v30 = vstv %s27
    %v31 = vmul.f32 %v26, %v30
    %v32 = vstv %s28
    %v33 = vadd.f32 %v31, %v32
    %v34 = vxor.u32 %v33, 2147483648
    %v35 = vmul.f32 %v34, 1.442695
    %v36 = vpow.pop %v35
    %v37 = vadd.f32 %v36, 1.0
    %v38 = vrcp.pop %v37
    %v39 = vmul.f32 1.0, %v38
    %v40 = vstv %s29
    %v41 = vmul.f32 %v40, %v39
    %v42 = vadd.f32 %v41, 0.0
    %s43 = sld [smem:[#allocation3 + $0x1]]
    %s44 = sld [smem:[#allocation3 + $0xb]]
    %s45 = sld [smem:[#allocation3 + $0x15]]
    %v46 = vstv %s43
    %v47 = vmul.f32 %v26, %v46
    %v48 = vstv %s44
    %v49 = vadd.f32 %v47, %v48
    %v50 = vxor.u32 %v49, 2147483648
    %v51 = vmul.f32 %v50, 1.442695
    %v52 = vpow.pop %v51
    %v53 = vadd.f32 %v52, 1.0
    %v54 = vrcp.pop %v53
    %v55 = vmul.f32 1.0, %v54
    %v56 = vstv %s45
    %v57 = vmul.f32 %v56, %v55
    %v58 = vadd.f32 %v42, %v57
    %s59 = sld [smem:[#allocation3 + $0x2]]
    %s60 = sld [smem:[#allocation3 + $0xc]]
    %s61 = sld [smem:[#allocation3 + $0x16]]
    %v62 = vstv %s59
    %v63 = vmul.f32 %v26, %v62
    %v64 = vstv %s60
    %v65 = vadd.f32 %v63, %v64
    %v66 = vxor.u32 %v65, 2147483648
    %v67 = vmul.f32 %v66, 1.442695
    %v68 = vpow.pop %v67
    %v69 = vadd.f32 %v68, 1.0
    %v70 = vrcp.pop %v69
    %v71 = vmul.f32 1.0, %v70
    %v72 = vstv %s61
    %v73 = vmul.f32 %v72, %v71
    %v74 = vadd.f32 %v58, %v73
    %s75 = sld [smem:[#allocation3 + $0x3]]
    %s76 = sld [smem:[#allocation3 + $0xd]]
    %s77 = sld [smem:[#allocation3 + $0x17]]
    %v78 = vstv %s75
    %v79 = vmul.f32 %v26, %v78
    %v80 = vstv %s76
    %v81 = vadd.f32 %v79, %v80
    %v82 = vxor.u32 %v81, 2147483648
    %v83 = vmul.f32 %v82, 1.442695
    %v84 = vpow.pop %v83
    %v85 = vadd.f32 %v84, 1.0
    %v86 = vrcp.pop %v85
    %v87 = vmul.f32 1.0, %v86
    %v88 = vstv %s77
    %v89 = vmul.f32 %v88, %v87
    %v90 = vadd.f32 %v74, %v89
    %s91 = sld [smem:[#allocation3 + $0x4]]
    %s92 = sld [smem:[#allocation3 + $0xe]]
    %s93 = sld [smem:[#allocation3 + $0x18]]
    %v94 = vstv %s91
    %v95 = vmul.f32 %v26, %v94
    %v96 = vstv %s92
    %v97 = vadd.f32 %v95, %v96
    %v98 = vxor.u32 %v97, 2147483648
    %v99 = vmul.f32 %v98, 1.442695
    %v100 = vpow.pop %v99
    %v101 = vadd.f32 %v100, 1.0
    %v102 = vrcp.pop %v101
    %v103 = vmul.f32 1.0, %v102
    %v104 = vstv %s93
    %v105 = vmul.f32 %v104, %v103
    %v106 = vadd.f32 %v90, %v105
    %s107 = sld [smem:[#allocation3 + $0x5]]
    %s108 = sld [smem:[#allocation3 + $0xf]]
    %s109 = sld [smem:[#allocation3 + $0x19]]
    %v110 = vstv %s107
    %v111 = vmul.f32 %v26, %v110
    %v112 = vstv %s108
    %v113 = vadd.f32 %v111, %v112
    %v114 = vxor.u32 %v113, 2147483648
    %v115 = vmul.f32 %v114, 1.442695
    %v116 = vpow.pop %v115
    %v117 = vadd.f32 %v116, 1.0
    %v118 = vrcp.pop %v117
    %v119 = vmul.f32 1.0, %v118
    %v120 = vstv %s109
    %v121 = vmul.f32 %v120, %v119
    %v122 = vadd.f32 %v106, %v121
    %s123 = sld [smem:[#allocation3 + $0x6]]
    %s124 = sld [smem:[#allocation3 + $0x10]]
    %s125 = sld [smem:[#allocation3 + $0x1a]]
    %v126 = vstv %s123
    %v127 = vmul.f32 %v26, %v126
    %v128 = vstv %s124
    %v129 = vadd.f32 %v127, %v128
    %v130 = vxor.u32 %v129, 2147483648
    %v131 = vmul.f32 %v130, 1.442695
    %v132 = vpow.pop %v131
    %v133 = vadd.f32 %v132, 1.0
    %v134 = vrcp.pop %v133
    %v135 = vmul.f32 1.0, %v134
    %v136 = vstv %s125
    %v137 = vmul.f32 %v136, %v135
    %v138 = vadd.f32 %v122, %v137
    %s139 = sld [smem:[#allocation3 + $0x7]]
    %s140 = sld [smem:[#allocation3 + $0x11]]
    %s141 = sld [smem:[#allocation3 + $0x1b]]
    %v142 = vstv %s139
    %v143 = vmul.f32 %v26, %v142
    %v144 = vstv %s140
    %v145 = vadd.f32 %v143, %v144
    %v146 = vxor.u32 %v145, 2147483648
    %v147 = vmul.f32 %v146, 1.442695
    %v148 = vpow.pop %v147
    %v149 = vadd.f32 %v148, 1.0
    %v150 = vrcp.pop %v149
    %v151 = vmul.f32 1.0, %v150
    %v152 = vstv %s141
    %v153 = vmul.f32 %v152, %v151
    %v154 = vadd.f32 %v138, %v153
    %s155 = sld [smem:[#allocation3 + $0x8]]
    %s156 = sld [smem:[#allocation3 + $0x12]]
    %s157 = sld [smem:[#allocation3 + $0x1c]]
    %v158 = vstv %s155
    %v159 = vmul.f32 %v26, %v158
    %v160 = vstv %s156
    %v161 = vadd.f32 %v159, %v160
    %v162 = vxor.u32 %v161, 2147483648
    %v163 = vmul.f32 %v162, 1.442695
    %v164 = vpow.pop %v163
    %v165 = vadd.f32 %v164, 1.0
    %v166 = vrcp.pop %v165
    %v167 = vmul.f32 1.0, %v166
    %v168 = vstv %s157
    %v169 = vmul.f32 %v168, %v167
    %v170 = vadd.f32 %v154, %v169
    %s171 = sld [smem:[#allocation3 + $0x9]]
    %s172 = sld [smem:[#allocation3 + $0x13]]
    %s173 = sld [smem:[#allocation3 + $0x1d]]
    %v174 = vstv %s171
    %v175 = vmul.f32 %v26, %v174
    %v176 = vstv %s172
    %v177 = vadd.f32 %v175, %v176
    %v178 = vxor.u32 %v177, 2147483648
    %v179 = vmul.f32 %v178, 1.442695
    %v180 = vpow.pop %v179
    %v181 = vadd.f32 %v180, 1.0
    %v182 = vrcp.pop %v181
    %v183 = vmul.f32 1.0, %v182
    %v184 = vstv %s173
    %v185 = vmul.f32 %v184, %v183
    %v186 = vadd.f32 %v170, %v185
    %s187 = sld [smem:[#allocation3 + $0x1e]]
    %v188 = vstv %s187
    %v189 = vadd.f32 %v186, %v188
    %190 = vst [vmem:[#allocation7] sm:$0xff] %v189
    // Predicated region
    $region10: #{tpu_custom_call.1} parent=1 // pred_check
      _
    $region11: #{tpu_custom_call.1} parent=1 // pred_check_branch
      %192 = sbr.rel (0) target = $region13
    $region12: #{tpu_custom_call.1} parent=1 // pred_region
      %s194 = ssub.s32 128, 128
      %195 = vsyncadd [#allocation6], %s194
      %s197 = sshll.u32 [#allocation7], 4
      %s198 = int_to_ptr.vmem [resolvable:$true] %s197
      %200 = dma.vmem_to_hbm [thread:$0]  %s198, 128, %s2, [#allocation6]
    $region13: #{tpu_custom_call.1} parent=1 // pred_fallthru
      _
    // Predicated region
    $region14: #{tpu_custom_call.1} parent=1 // pred_check
      _
    $region15: #{tpu_custom_call.1} parent=1 // pred_check_branch
      %202 = sbr.rel (0) target = $region17
    $region16: #{tpu_custom_call.1} parent=1 // pred_region
      %203 = dma.done [#allocation6], 128
    $region17: #{tpu_custom_call.1} parent=1 // pred_fallthru
      _
    %204 = vsyncpa [#allocation5], 1
    %205 = vsyncpa [#allocation6], 1

</llo_original>
